<compile_context>
chip_gen: v7x
topology: tpu7x:2x2x1
jax: 0.10.0
libtpu: 0.0.40
codegen_flags: <defaults>
</compile_context>

<pallas_src>
import functools

import jax
import jax.numpy as jnp
from jax import lax
from jax.experimental import pallas as pl
from jax.experimental.pallas import tpu as pltpu


def _round_up(x, m):
    return (x + m - 1) // m * m


_GATHER_UNROLL = 8  # rows gathered per fori_loop iteration (tb is a multiple of 128)


def _dot_bias_store(u_buf, i_buf, bias_ref, o_ref):
    """Shared compute tail: elementwise mul (VPU) + lane reduce (XLU) + bias."""
    prod = u_buf[...] * i_buf[...]               # (tb, Dp)
    dots = jnp.sum(prod, axis=-1)                # (tb,)
    o_ref[0, 0, :] = dots + bias_ref[0, 0, :]    # single lane-dense store


def _mf_kernel_vmem(uid_ref, iid_ref, ue_ref, ie_ref, bias_ref, o_ref,
                    u_buf, i_buf, *, tb):
    """Tables resident in VMEM; gather via dynamic row loads (no per-row DMA).

    uid_ref / iid_ref : (B_pad,) int32 in SMEM (scalar prefetch).
    ue_ref / ie_ref   : (Up, Dp) / (Ip, Dp) float32 VMEM (full-array blocks).
    bias_ref          : (1, 1, tb) float32 = mu + b_u[uid] + b_i[iid].
    o_ref             : (1, 1, tb) float32 lane-dense output tile.
    u_buf / i_buf     : (tb, Dp) float32 VMEM gather scratch.
    """
    t = pl.program_id(0)
    base = t * tb

    def gather(j, carry):
        r0 = j * _GATHER_UNROLL
        for k in range(_GATHER_UNROLL):          # unrolled: lets LLO overlap rows
            r = r0 + k
            u = uid_ref[base + r]
            i = iid_ref[base + r]
            u_buf[pl.ds(r, 1), :] = ue_ref[pl.ds(u, 1), :]
            i_buf[pl.ds(r, 1), :] = ie_ref[pl.ds(i, 1), :]
        return carry

    lax.fori_loop(0, tb // _GATHER_UNROLL, gather, 0)
    _dot_bias_store(u_buf, i_buf, bias_ref, o_ref)


def _mf_kernel_hbm(uid_ref, iid_ref, ue_hbm, ie_hbm, bias_ref, o_ref,
                   u_buf, i_buf, sem, *, tb):
    """Fallback for tables too large for VMEM: per-row async HBM gather.

    Issues all 2*tb row copies before waiting on any so the DMA engine has a
    deep queue of outstanding small copies.
    """
    t = pl.program_id(0)
    base = t * tb

    def issue(r, carry):
        u = uid_ref[base + r]
        i = iid_ref[base + r]
        pltpu.make_async_copy(ue_hbm.at[pl.ds(u, 1), :],
                              u_buf.at[pl.ds(r, 1), :], sem.at[0]).start()
        pltpu.make_async_copy(ie_hbm.at[pl.ds(i, 1), :],
                              i_buf.at[pl.ds(r, 1), :], sem.at[1]).start()
        return carry

    lax.fori_loop(0, tb, issue, 0)

    # Every row copy has identical size -> wait with a representative descriptor
    # once per issued copy.
    def drain(r, carry):
        pltpu.make_async_copy(ue_hbm.at[pl.ds(0, 1), :],
                              u_buf.at[pl.ds(0, 1), :], sem.at[0]).wait()
        pltpu.make_async_copy(ie_hbm.at[pl.ds(0, 1), :],
                              i_buf.at[pl.ds(0, 1), :], sem.at[1]).wait()
        return carry

    lax.fori_loop(0, tb, drain, 0)
    _dot_bias_store(u_buf, i_buf, bias_ref, o_ref)


def mf_forward(x, user_emb, item_emb, b_u, b_i, mu, *, tb=256):
    """x: (B, 2) int [uid, iid]; user_emb: (U, D); item_emb: (I, D);
    b_u: (U,); b_i: (I,). Returns (B,) float32."""
    B = x.shape[0]
    U, D = user_emb.shape
    I, D2 = item_emb.shape
    assert D2 == D

    uid = x[:, 0].astype(jnp.int32)
    iid = x[:, 1].astype(jnp.int32)

    # Lane-pad the hidden dim to a multiple of 128 (zero padding does not change
    # the dot product) and sublane-pad the row counts to multiples of 8.
    Dp = _round_up(D, 128)
    Up = _round_up(U, 8)
    Ip = _round_up(I, 8)
    ue = user_emb.astype(jnp.float32)
    ie = item_emb.astype(jnp.float32)
    if (Up, Dp) != (U, D):
        ue = jnp.pad(ue, ((0, Up - U), (0, Dp - D)))
    if (Ip, Dp) != (I, D):
        ie = jnp.pad(ie, ((0, Ip - I), (0, Dp - D)))

    # Batch tile size: multiple of 128 (lane-dense output), no bigger than needed.
    tb = max(128, min(_round_up(tb, 128), _round_up(B, 128)))
    B_pad = _round_up(B, tb)
    n_tiles = B_pad // tb
    pad = B_pad - B
    uid_p = jnp.pad(uid, (0, pad))      # padded entries gather row 0; sliced off below
    iid_p = jnp.pad(iid, (0, pad))

    # Fold mu + both scalar biases into one lane-dense per-example input
    # (removes the two 4-byte bias fetches per example from the kernel).
    bias = (jnp.float32(mu)
            + b_u.astype(jnp.float32)[uid_p]
            + b_i.astype(jnp.float32)[iid_p]).reshape(n_tiles, 1, tb)

    # Keep tables resident in VMEM when they (worst-case double-buffered) plus the
    # gather scratch fit comfortably under the 32 MiB default scoped-VMEM limit.
    table_bytes = (Up + Ip) * Dp * 4
    gather_bytes = 2 * tb * Dp * 4
    use_vmem_tables = 2 * table_bytes + 2 * gather_bytes <= 24 * 1024 * 1024

    bias_spec = pl.BlockSpec((1, 1, tb), lambda t, u_r, i_r: (t, 0, 0))
    out_spec = pl.BlockSpec((1, 1, tb), lambda t, u_r, i_r: (t, 0, 0))

    if use_vmem_tables:
        kernel = functools.partial(_mf_kernel_vmem, tb=tb)
        in_specs = [
            # Full-array blocks with a constant index_map: copied HBM->VMEM once.
            pl.BlockSpec((Up, Dp), lambda t, u_r, i_r: (0, 0)),
            pl.BlockSpec((Ip, Dp), lambda t, u_r, i_r: (0, 0)),
            bias_spec,
        ]
        scratch_shapes = [
            pltpu.VMEM((tb, Dp), jnp.float32),
            pltpu.VMEM((tb, Dp), jnp.float32),
        ]
    else:
        kernel = functools.partial(_mf_kernel_hbm, tb=tb)
        in_specs = [
            pl.BlockSpec(memory_space=pl.ANY),   # user_emb stays in HBM
            pl.BlockSpec(memory_space=pl.ANY),   # item_emb stays in HBM
            bias_spec,
        ]
        scratch_shapes = [
            pltpu.VMEM((tb, Dp), jnp.float32),
            pltpu.VMEM((tb, Dp), jnp.float32),
            pltpu.SemaphoreType.DMA((2,)),
        ]

    grid_spec = pltpu.PrefetchScalarGridSpec(
        num_scalar_prefetch=2,          # uid, iid -> SMEM, read inside the kernel
        grid=(n_tiles,),
        in_specs=in_specs,
        out_specs=out_spec,
        scratch_shapes=scratch_shapes,
    )

    out = pl.pallas_call(
        kernel,
        grid_spec=grid_spec,
        out_shape=jax.ShapeDtypeStruct((n_tiles, 1, tb), jnp.float32),
        compiler_params=pltpu.CompilerParams(
            dimension_semantics=("parallel",),   # batch tiles are independent
        ),
    )(uid_p, iid_p, ue, ie, bias)

    return out.reshape(B_pad)[:B]


if __name__ == "__main__":
    key = jax.random.PRNGKey(0)

    # Small synthetic config consistent with the module's __init__.
    n_users, n_items, hidden_dim, batch = 64, 48, 64, 8
    n_rows, n_neg = 1000, 4
    mu = n_rows / (n_rows + n_users * n_neg)

    k1, k2, k3, k4, k5, k6 = jax.random.split(key, 6)

    # xavier_normal_: std = sqrt(2 / (fan_in + fan_out))
    u_std = (2.0 / (n_users + hidden_dim)) ** 0.5
    i_std = (2.0 / (n_items + hidden_dim)) ** 0.5
    user_emb = u_std * jax.random.normal(k1, (n_users, hidden_dim), jnp.float32)
    item_emb = i_std * jax.random.normal(k2, (n_items, hidden_dim), jnp.float32)

    # The module initializes b_u / b_i to zeros; use small deterministic random
    # values here so the bias path is actually exercised.
    b_u = 0.01 * jax.random.normal(k3, (n_users,), jnp.float32)
    b_i = 0.01 * jax.random.normal(k4, (n_items,), jnp.float32)

    uid = jax.random.randint(k5, (batch,), 0, n_users, dtype=jnp.int32)
    iid = jax.random.randint(k6, (batch,), 0, n_items, dtype=jnp.int32)
    x = jnp.stack([uid, iid], axis=1)   # (B, 2), matches torch forward's x[:, 0/1]

    out = jax.block_until_ready(mf_forward(x, user_emb, item_emb, b_u, b_i, mu))

    # Pure-JAX reference for correctness.
    ref = mu + jnp.sum(user_emb[uid] * item_emb[iid], axis=1) + b_u[uid] + b_i[iid]
    assert out.shape == (batch,)
    assert out.dtype == jnp.float32
    assert jnp.allclose(out, ref, atol=1e-5, rtol=1e-5), (out, ref)

    print("KERNEL_OK")
</pallas_src>

<mosaic_0001>
module attributes {stable_mosaic.version = 11 : i64} {
  func.func @_mf_kernel_vmem(%arg0: i32, %arg1: memref<128xi32, #tpu.memory_space<smem>>, %arg2: memref<128xi32, #tpu.memory_space<smem>>, %arg3: memref<64x128xf32, #tpu.memory_space<vmem>>, %arg4: memref<48x128xf32, #tpu.memory_space<vmem>>, %arg5: memref<1x1x128xf32, #tpu.memory_space<vmem>>, %arg6: memref<1x1x128xf32, #tpu.memory_space<vmem>>, %arg7: memref<128x128xf32, #tpu.memory_space<vmem>>, %arg8: memref<128x128xf32, #tpu.memory_space<vmem>>) attributes {dimension_semantics = [#tpu.dimension_semantics<parallel>], iteration_bounds = array<i64: 1>, scalar_prefetch = 2 : i64, scratch_operands = 2 : i64, tpu.core_type = #tpu.core_type<tc>, window_params = [{pipeline_mode = #tpu.pipeline_mode<synchronous>, transform_indices = @transform_0, window_bounds = array<i64: 64, 128>}, {pipeline_mode = #tpu.pipeline_mode<synchronous>, transform_indices = @transform_1, window_bounds = array<i64: 48, 128>}, {transform_indices = @transform_2, window_bounds = array<i64: 1, 1, 128>}, {transform_indices = @transform_3, window_bounds = array<i64: 1, 1, 128>}]} {
    %c128_i32 = arith.constant 128 : i32
    %0 = arith.muli %arg0, %c128_i32 : i32
    %c0_i32 = arith.constant 0 : i32
    %c16_i32 = arith.constant 16 : i32
    %1 = arith.addi %c0_i32, %c16_i32 : i32
    %c1_i32 = arith.constant 1 : i32
    scf.for %arg9 = %c0_i32 to %1 step %c1_i32  : i32 {
      %c8_i32 = arith.constant 8 : i32
      %12 = arith.muli %arg9, %c8_i32 : i32
      %c0_i32_10 = arith.constant 0 : i32
      %13 = arith.addi %12, %c0_i32_10 : i32
      %14 = arith.addi %0, %13 : i32
      %15 = arith.index_cast %14 : i32 to index
      %16 = memref.load %arg1[%15] : memref<128xi32, #tpu.memory_space<smem>>
      %17 = arith.addi %0, %13 : i32
      %18 = arith.index_cast %17 : i32 to index
      %19 = memref.load %arg2[%18] : memref<128xi32, #tpu.memory_space<smem>>
      %20 = arith.index_cast %16 : i32 to index
      %c0_11 = arith.constant 0 : index
      %21 = vector.load %arg3[%20, %c0_11] : memref<64x128xf32, #tpu.memory_space<vmem>>, vector<1x128xf32>
      %22 = arith.index_cast %13 : i32 to index
      %c0_12 = arith.constant 0 : index
      %23 = vector.load %arg7[%22, %c0_12] : memref<128x128xf32, #tpu.memory_space<vmem>>, vector<1x128xf32>
      tpu.vector_store %arg7[%22, %c0_12], %21 {strides = array<i32>} : memref<128x128xf32, #tpu.memory_space<vmem>>, vector<1x128xf32>,
      %24 = arith.index_cast %19 : i32 to index
      %c0_13 = arith.constant 0 : index
      %25 = vector.load %arg4[%24, %c0_13] : memref<48x128xf32, #tpu.memory_space<vmem>>, vector<1x128xf32>
      %26 = arith.index_cast %13 : i32 to index
      %c0_14 = arith.constant 0 : index
      %27 = vector.load %arg8[%26, %c0_14] : memref<128x128xf32, #tpu.memory_space<vmem>>, vector<1x128xf32>
      tpu.vector_store %arg8[%26, %c0_14], %25 {strides = array<i32>} : memref<128x128xf32, #tpu.memory_space<vmem>>, vector<1x128xf32>,
      %c1_i32_15 = arith.constant 1 : i32
      %28 = arith.addi %12, %c1_i32_15 : i32
      %29 = arith.addi %0, %28 : i32
      %30 = arith.index_cast %29 : i32 to index
      %31 = memref.load %arg1[%30] : memref<128xi32, #tpu.memory_space<smem>>
      %32 = arith.addi %0, %28 : i32
      %33 = arith.index_cast %32 : i32 to index
      %34 = memref.load %arg2[%33] : memref<128xi32, #tpu.memory_space<smem>>
      %35 = arith.index_cast %31 : i32 to index
      %c0_16 = arith.constant 0 : index
      %36 = vector.load %arg3[%35, %c0_16] : memref<64x128xf32, #tpu.memory_space<vmem>>, vector<1x128xf32>
      %37 = arith.index_cast %28 : i32 to index
      %c0_17 = arith.constant 0 : index
      %38 = vector.load %arg7[%37, %c0_17] : memref<128x128xf32, #tpu.memory_space<vmem>>, vector<1x128xf32>
      tpu.vector_store %arg7[%37, %c0_17], %36 {strides = array<i32>} : memref<128x128xf32, #tpu.memory_space<vmem>>, vector<1x128xf32>,
      %39 = arith.index_cast %34 : i32 to index
      %c0_18 = arith.constant 0 : index
      %40 = vector.load %arg4[%39, %c0_18] : memref<48x128xf32, #tpu.memory_space<vmem>>, vector<1x128xf32>
      %41 = arith.index_cast %28 : i32 to index
      %c0_19 = arith.constant 0 : index
      %42 = vector.load %arg8[%41, %c0_19] : memref<128x128xf32, #tpu.memory_space<vmem>>, vector<1x128xf32>
      tpu.vector_store %arg8[%41, %c0_19], %40 {strides = array<i32>} : memref<128x128xf32, #tpu.memory_space<vmem>>, vector<1x128xf32>,
      %c2_i32 = arith.constant 2 : i32
      %43 = arith.addi %12, %c2_i32 : i32
      %44 = arith.addi %0, %43 : i32
      %45 = arith.index_cast %44 : i32 to index
      %46 = memref.load %arg1[%45] : memref<128xi32, #tpu.memory_space<smem>>
      %47 = arith.addi %0, %43 : i32
      %48 = arith.index_cast %47 : i32 to index
      %49 = memref.load %arg2[%48] : memref<128xi32, #tpu.memory_space<smem>>
      %50 = arith.index_cast %46 : i32 to index
      %c0_20 = arith.constant 0 : index
      %51 = vector.load %arg3[%50, %c0_20] : memref<64x128xf32, #tpu.memory_space<vmem>>, vector<1x128xf32>
      %52 = arith.index_cast %43 : i32 to index
      %c0_21 = arith.constant 0 : index
      %53 = vector.load %arg7[%52, %c0_21] : memref<128x128xf32, #tpu.memory_space<vmem>>, vector<1x128xf32>
      tpu.vector_store %arg7[%52, %c0_21], %51 {strides = array<i32>} : memref<128x128xf32, #tpu.memory_space<vmem>>, vector<1x128xf32>,
      %54 = arith.index_cast %49 : i32 to index
      %c0_22 = arith.constant 0 : index
      %55 = vector.load %arg4[%54, %c0_22] : memref<48x128xf32, #tpu.memory_space<vmem>>, vector<1x128xf32>
      %56 = arith.index_cast %43 : i32 to index
      %c0_23 = arith.constant 0 : index
      %57 = vector.load %arg8[%56, %c0_23] : memref<128x128xf32, #tpu.memory_space<vmem>>, vector<1x128xf32>
      tpu.vector_store %arg8[%56, %c0_23], %55 {strides = array<i32>} : memref<128x128xf32, #tpu.memory_space<vmem>>, vector<1x128xf32>,
      %c3_i32 = arith.constant 3 : i32
      %58 = arith.addi %12, %c3_i32 : i32
      %59 = arith.addi %0, %58 : i32
      %60 = arith.index_cast %59 : i32 to index
      %61 = memref.load %arg1[%60] : memref<128xi32, #tpu.memory_space<smem>>
      %62 = arith.addi %0, %58 : i32
      %63 = arith.index_cast %62 : i32 to index
      %64 = memref.load %arg2[%63] : memref<128xi32, #tpu.memory_space<smem>>
      %65 = arith.index_cast %61 : i32 to index
      %c0_24 = arith.constant 0 : index
      %66 = vector.load %arg3[%65, %c0_24] : memref<64x128xf32, #tpu.memory_space<vmem>>, vector<1x128xf32>
      %67 = arith.index_cast %58 : i32 to index
      %c0_25 = arith.constant 0 : index
      %68 = vector.load %arg7[%67, %c0_25] : memref<128x128xf32, #tpu.memory_space<vmem>>, vector<1x128xf32>
      tpu.vector_store %arg7[%67, %c0_25], %66 {strides = array<i32>} : memref<128x128xf32, #tpu.memory_space<vmem>>, vector<1x128xf32>,
      %69 = arith.index_cast %64 : i32 to index
      %c0_26 = arith.constant 0 : index
      %70 = vector.load %arg4[%69, %c0_26] : memref<48x128xf32, #tpu.memory_space<vmem>>, vector<1x128xf32>
      %71 = arith.index_cast %58 : i32 to index
      %c0_27 = arith.constant 0 : index
      %72 = vector.load %arg8[%71, %c0_27] : memref<128x128xf32, #tpu.memory_space<vmem>>, vector<1x128xf32>
      tpu.vector_store %arg8[%71, %c0_27], %70 {strides = array<i32>} : memref<128x128xf32, #tpu.memory_space<vmem>>, vector<1x128xf32>,
      %c4_i32 = arith.constant 4 : i32
      %73 = arith.addi %12, %c4_i32 : i32
      %74 = arith.addi %0, %73 : i32
      %75 = arith.index_cast %74 : i32 to index
      %76 = memref.load %arg1[%75] : memref<128xi32, #tpu.memory_space<smem>>
      %77 = arith.addi %0, %73 : i32
      %78 = arith.index_cast %77 : i32 to index
      %79 = memref.load %arg2[%78] : memref<128xi32, #tpu.memory_space<smem>>
      %80 = arith.index_cast %76 : i32 to index
      %c0_28 = arith.constant 0 : index
      %81 = vector.load %arg3[%80, %c0_28] : memref<64x128xf32, #tpu.memory_space<vmem>>, vector<1x128xf32>
      %82 = arith.index_cast %73 : i32 to index
      %c0_29 = arith.constant 0 : index
      %83 = vector.load %arg7[%82, %c0_29] : memref<128x128xf32, #tpu.memory_space<vmem>>, vector<1x128xf32>
      tpu.vector_store %arg7[%82, %c0_29], %81 {strides = array<i32>} : memref<128x128xf32, #tpu.memory_space<vmem>>, vector<1x128xf32>,
      %84 = arith.index_cast %79 : i32 to index
      %c0_30 = arith.constant 0 : index
      %85 = vector.load %arg4[%84, %c0_30] : memref<48x128xf32, #tpu.memory_space<vmem>>, vector<1x128xf32>
      %86 = arith.index_cast %73 : i32 to index
      %c0_31 = arith.constant 0 : index
      %87 = vector.load %arg8[%86, %c0_31] : memref<128x128xf32, #tpu.memory_space<vmem>>, vector<1x128xf32>
      tpu.vector_store %arg8[%86, %c0_31], %85 {strides = array<i32>} : memref<128x128xf32, #tpu.memory_space<vmem>>, vector<1x128xf32>,
      %c5_i32 = arith.constant 5 : i32
      %88 = arith.addi %12, %c5_i32 : i32
      %89 = arith.addi %0, %88 : i32
      %90 = arith.index_cast %89 : i32 to index
      %91 = memref.load %arg1[%90] : memref<128xi32, #tpu.memory_space<smem>>
      %92 = arith.addi %0, %88 : i32
      %93 = arith.index_cast %92 : i32 to index
      %94 = memref.load %arg2[%93] : memref<128xi32, #tpu.memory_space<smem>>
      %95 = arith.index_cast %91 : i32 to index
      %c0_32 = arith.constant 0 : index
      %96 = vector.load %arg3[%95, %c0_32] : memref<64x128xf32, #tpu.memory_space<vmem>>, vector<1x128xf32>
      %97 = arith.index_cast %88 : i32 to index
      %c0_33 = arith.constant 0 : index
      %98 = vector.load %arg7[%97, %c0_33] : memref<128x128xf32, #tpu.memory_space<vmem>>, vector<1x128xf32>
      tpu.vector_store %arg7[%97, %c0_33], %96 {strides = array<i32>} : memref<128x128xf32, #tpu.memory_space<vmem>>, vector<1x128xf32>,
      %99 = arith.index_cast %94 : i32 to index
      %c0_34 = arith.constant 0 : index
      %100 = vector.load %arg4[%99, %c0_34] : memref<48x128xf32, #tpu.memory_space<vmem>>, vector<1x128xf32>
      %101 = arith.index_cast %88 : i32 to index
      %c0_35 = arith.constant 0 : index
      %102 = vector.load %arg8[%101, %c0_35] : memref<128x128xf32, #tpu.memory_space<vmem>>, vector<1x128xf32>
      tpu.vector_store %arg8[%101, %c0_35], %100 {strides = array<i32>} : memref<128x128xf32, #tpu.memory_space<vmem>>, vector<1x128xf32>,
      %c6_i32 = arith.constant 6 : i32
      %103 = arith.addi %12, %c6_i32 : i32
      %104 = arith.addi %0, %103 : i32
      %105 = arith.index_cast %104 : i32 to index
      %106 = memref.load %arg1[%105] : memref<128xi32, #tpu.memory_space<smem>>
      %107 = arith.addi %0, %103 : i32
      %108 = arith.index_cast %107 : i32 to index
      %109 = memref.load %arg2[%108] : memref<128xi32, #tpu.memory_space<smem>>
      %110 = arith.index_cast %106 : i32 to index
      %c0_36 = arith.constant 0 : index
      %111 = vector.load %arg3[%110, %c0_36] : memref<64x128xf32, #tpu.memory_space<vmem>>, vector<1x128xf32>
      %112 = arith.index_cast %103 : i32 to index
      %c0_37 = arith.constant 0 : index
      %113 = vector.load %arg7[%112, %c0_37] : memref<128x128xf32, #tpu.memory_space<vmem>>, vector<1x128xf32>
      tpu.vector_store %arg7[%112, %c0_37], %111 {strides = array<i32>} : memref<128x128xf32, #tpu.memory_space<vmem>>, vector<1x128xf32>,
      %114 = arith.index_cast %109 : i32 to index
      %c0_38 = arith.constant 0 : index
      %115 = vector.load %arg4[%114, %c0_38] : memref<48x128xf32, #tpu.memory_space<vmem>>, vector<1x128xf32>
      %116 = arith.index_cast %103 : i32 to index
      %c0_39 = arith.constant 0 : index
      %117 = vector.load %arg8[%116, %c0_39] : memref<128x128xf32, #tpu.memory_space<vmem>>, vector<1x128xf32>
      tpu.vector_store %arg8[%116, %c0_39], %115 {strides = array<i32>} : memref<128x128xf32, #tpu.memory_space<vmem>>, vector<1x128xf32>,
      %c7_i32 = arith.constant 7 : i32
      %118 = arith.addi %12, %c7_i32 : i32
      %119 = arith.addi %0, %118 : i32
      %120 = arith.index_cast %119 : i32 to index
      %121 = memref.load %arg1[%120] : memref<128xi32, #tpu.memory_space<smem>>
      %122 = arith.addi %0, %118 : i32
      %123 = arith.index_cast %122 : i32 to index
      %124 = memref.load %arg2[%123] : memref<128xi32, #tpu.memory_space<smem>>
      %125 = arith.index_cast %121 : i32 to index
      %c0_40 = arith.constant 0 : index
      %126 = vector.load %arg3[%125, %c0_40] : memref<64x128xf32, #tpu.memory_space<vmem>>, vector<1x128xf32>
      %127 = arith.index_cast %118 : i32 to index
      %c0_41 = arith.constant 0 : index
      %128 = vector.load %arg7[%127, %c0_41] : memref<128x128xf32, #tpu.memory_space<vmem>>, vector<1x128xf32>
      tpu.vector_store %arg7[%127, %c0_41], %126 {strides = array<i32>} : memref<128x128xf32, #tpu.memory_space<vmem>>, vector<1x128xf32>,
      %129 = arith.index_cast %124 : i32 to index
      %c0_42 = arith.constant 0 : index
      %130 = vector.load %arg4[%129, %c0_42] : memref<48x128xf32, #tpu.memory_space<vmem>>, vector<1x128xf32>
      %131 = arith.index_cast %118 : i32 to index
      %c0_43 = arith.constant 0 : index
      %132 = vector.load %arg8[%131, %c0_43] : memref<128x128xf32, #tpu.memory_space<vmem>>, vector<1x128xf32>
      tpu.vector_store %arg8[%131, %c0_43], %130 {strides = array<i32>} : memref<128x128xf32, #tpu.memory_space<vmem>>, vector<1x128xf32>,
    }
    %c16_i32_0 = arith.constant 16 : i32
    %c0 = arith.constant 0 : index
    %c0_1 = arith.constant 0 : index
    %2 = vector.load %arg7[%c0, %c0_1] : memref<128x128xf32, #tpu.memory_space<vmem>>, vector<128x128xf32>
    %c0_2 = arith.constant 0 : index
    %c0_3 = arith.constant 0 : index
    %3 = vector.load %arg8[%c0_2, %c0_3] : memref<128x128xf32, #tpu.memory_space<vmem>>, vector<128x128xf32>
    %4 = arith.mulf %2, %3 : vector<128x128xf32>
    %cst = arith.constant dense<0.000000e+00> : vector<128xf32>
    %5 = vector.multi_reduction <add>, %4, %cst [1] : vector<128x128xf32> to vector<128xf32>
    %c0_4 = arith.constant 0 : index
    %c0_5 = arith.constant 0 : index
    %c0_6 = arith.constant 0 : index
    %6 = vector.load %arg5[%c0_4, %c0_5, %c0_6] : memref<1x1x128xf32, #tpu.memory_space<vmem>>, vector<1x1x128xf32>
    %7 = vector.shape_cast %6 : vector<1x1x128xf32> to vector<128xf32>
    %8 = arith.addf %5, %7 : vector<128xf32>
    %c0_7 = arith.constant 0 : index
    %c0_8 = arith.constant 0 : index
    %c0_9 = arith.constant 0 : index
    %9 = vector.load %arg6[%c0_7, %c0_8, %c0_9] : memref<1x1x128xf32, #tpu.memory_space<vmem>>, vector<1x1x128xf32>
    %10 = vector.shape_cast %9 : vector<1x1x128xf32> to vector<128xf32>
    %11 = vector.shape_cast %8 : vector<128xf32> to vector<1x1x128xf32>
    tpu.vector_store %arg6[%c0_7, %c0_8, %c0_9], %11 {strides = array<i32>} : memref<1x1x128xf32, #tpu.memory_space<vmem>>, vector<1x1x128xf32>,
    return
  }
  func.func @transform_0(%arg0: i32, %arg1: memref<128xi32, #tpu.memory_space<smem>>, %arg2: memref<128xi32, #tpu.memory_space<smem>>) -> (i32, i32) {
    %c0_i32 = arith.constant 0 : i32
    %c0_i32_0 = arith.constant 0 : i32
    %c0_i32_1 = arith.constant 0 : i32
    return %c0_i32, %c0_i32_0 : i32, i32
  }
  func.func @transform_1(%arg0: i32, %arg1: memref<128xi32, #tpu.memory_space<smem>>, %arg2: memref<128xi32, #tpu.memory_space<smem>>) -> (i32, i32) {
    %c0_i32 = arith.constant 0 : i32
    %c0_i32_0 = arith.constant 0 : i32
    %c0_i32_1 = arith.constant 0 : i32
    return %c0_i32, %c0_i32_0 : i32, i32
  }
  func.func @transform_2(%arg0: i32, %arg1: memref<128xi32, #tpu.memory_space<smem>>, %arg2: memref<128xi32, #tpu.memory_space<smem>>) -> (i32, i32, i32) {
    %c0_i32 = arith.constant 0 : i32
    %c0_i32_0 = arith.constant 0 : i32
    %c0_i32_1 = arith.constant 0 : i32
    return %arg0, %c0_i32, %c0_i32_0 : i32, i32, i32
  }
  func.func @transform_3(%arg0: i32, %arg1: memref<128xi32, #tpu.memory_space<smem>>, %arg2: memref<128xi32, #tpu.memory_space<smem>>) -> (i32, i32, i32) {
    %c0_i32 = arith.constant 0 : i32
    %c0_i32_0 = arith.constant 0 : i32
    %c0_i32_1 = arith.constant 0 : i32
    return %arg0, %c0_i32, %c0_i32_0 : i32, i32, i32
  }
}

</mosaic_0001>

<llo_original>
// kernel: tpu_custom_call.1
$region0: #{tpu_custom_call.1}
  #allocation0 [shape = 'u32[]', space=smem, size = 0x4, offset = 0x4, fixed_abs, tag = 'smem constant byte address 0x4 - core index']
  #allocation1 [shape = 'u32[144,128]{1,0:T(1,128)}', space=vmem, size = 0x12000, scoped, tag = 'internal scratch']
  #allocation2 [shape = 'f32[128,128]{1,0:T(8,128)}', space=vmem, size = 0x10000, scoped, tag = 'scratch operand']
  #allocation3 [shape = 'f32[128,128]{1,0:T(8,128)}', space=vmem, size = 0x10000, scoped, tag = 'scratch operand']
  #allocation4 [shape = 's32[1]{0}', space=sflag, size = 0x4, scoped, tag = 'scoped memory for tpu_custom_call.1']
  #allocation5 [shape = 'u8[512]{0}', space=smem, size = 0x200, scoped, tag = 'prefetched SMEM operand 0']
  #allocation6 [shape = 'u8[512]{0}', space=smem, size = 0x200, scoped, tag = 'prefetched SMEM operand 1']
  %s0 = inlined_call_operand.hbm [shape: s32[128], index: 0, kind: input, shape index: {}]
  %s1 = inlined_call_operand.vmem [shape: s32[128], index: 1, kind: input, shape index: {}]
  %s2 = inlined_call_operand.hbm [shape: f32[64,128], index: 2, kind: input, shape index: {}]
  %s3 = inlined_call_operand.hbm [shape: f32[48,128], index: 3, kind: input, shape index: {}]
  %s4 = inlined_call_operand.vmem [shape: f32[1,1,128], index: 4, kind: input, shape index: {}]
  %s5 = inlined_call_operand.hbm [shape: f32[1,1,128], index: 5, kind: output, shape index: {}]
  %s6 = sld [smem:[#allocation0]]
  $region37: #{tpu_custom_call.1} parent=0
    _
  %s8 = ssub.s32 1, %s6
  %s9 = scalar_select 0, %s8, %s6
  %11 = dma.hbm_to_smem %s0, 16, [#allocation5], [#allocation4]
  %s12 = sshll.u32 %s1, 4
  %s13 = int_to_ptr.vmem [resolvable:$true] %s12
  %15 = dma.vmem_to_smem %s13, 16, [#allocation6], [#allocation4]
  %16 = dma.done [#allocation4], 32
  %17 = sfence
  $region1: #{tpu_custom_call.1} parent=0
    #allocation7 [shape = 'u8[32768]{0}', space=vmem, size = 0x8000, scoped, tag = 'input window, operand 2, single buffered']
    #allocation8 [shape = 's32[1]{0}', space=sflag, size = 0x4, scoped, tag = 'scoped memory for tpu_custom_call.1']
    #allocation9 [shape = 's32[1]{0}', space=sflag, size = 0x4, scoped, tag = 'scoped memory for tpu_custom_call.1']
    #allocation10 [shape = 'u8[24576]{0}', space=vmem, size = 0x6000, scoped, tag = 'input window, operand 3, single buffered']
    #allocation11 [shape = 's32[1]{0}', space=sflag, size = 0x4, scoped, tag = 'scoped memory for tpu_custom_call.1']
    #allocation12 [shape = 'u8[512]{0}', space=vmem, size = 0x400, scoped, tag = 'output window, operand 0, single buffered']
    %18 = vsyncpa [#allocation8], 0
    %19 = vsyncpa [#allocation11], 0
    %20 = vsyncpa [#allocation9], 0
    // Predicated region
    $region2: #{tpu_custom_call.1} parent=1 // pred_check
      _
    $region3: #{tpu_custom_call.1} parent=1 // pred_check_branch
      %22 = sbr.rel (0) target = $region5
    $region4: #{tpu_custom_call.1} parent=1 // pred_region
      %s24 = ssub.s32 1024, 1024
      %25 = vsyncadd [#allocation8], %s24
      %s26 = sshll.u32 [#allocation7], 4
      %s27 = int_to_ptr.vmem [resolvable:$true] %s26
      %32 = dma.hbm_to_vmem [thread:$0]  %s2, 1024, %s27, [#allocation8], 128, 128, 8
    $region5: #{tpu_custom_call.1} parent=1 // pred_fallthru
      _
    // Predicated region
    $region6: #{tpu_custom_call.1} parent=1 // pred_check
      _
    $region7: #{tpu_custom_call.1} parent=1 // pred_check_branch
      %34 = sbr.rel (0) target = $region9
    $region8: #{tpu_custom_call.1} parent=1 // pred_region
      %s36 = ssub.s32 768, 768
      %37 = vsyncadd [#allocation11], %s36
      %s38 = sshll.u32 [#allocation10], 4
      %s39 = int_to_ptr.vmem [resolvable:$true] %s38
      %44 = dma.hbm_to_vmem [thread:$0]  %s3, 768, %s39, [#allocation11], 128, 128, 8
    $region9: #{tpu_custom_call.1} parent=1 // pred_fallthru
      _
    // Predicated region
    $region10: #{tpu_custom_call.1} parent=1 // pred_check
      _
    $region11: #{tpu_custom_call.1} parent=1 // pred_check_branch
      %46 = sbr.rel (0) target = $region13
    $region12: #{tpu_custom_call.1} parent=1 // pred_region
      _
    $region13: #{tpu_custom_call.1} parent=1 // pred_fallthru
      _
    // Predicated region
    $region14: #{tpu_custom_call.1} parent=1 // pred_check
      _
    $region15: #{tpu_custom_call.1} parent=1 // pred_check_branch
      %48 = sbr.rel (0) target = $region17
    $region16: #{tpu_custom_call.1} parent=1 // pred_region
      %49 = dma.done [#allocation8], 1024
    $region17: #{tpu_custom_call.1} parent=1 // pred_fallthru
      _
    // Predicated region
    $region18: #{tpu_custom_call.1} parent=1 // pred_check
      _
    $region19: #{tpu_custom_call.1} parent=1 // pred_check_branch
      %51 = sbr.rel (0) target = $region21
    $region20: #{tpu_custom_call.1} parent=1 // pred_region
      %52 = dma.done [#allocation11], 768
    $region21: #{tpu_custom_call.1} parent=1 // pred_fallthru
      _
    %s53 = smul.u32 0, 128
    loop: start=0, step=1, limit=16
    $region22: #{tpu_custom_call.1} parent=1 // loop_pre_header
      _
    $region23: #{tpu_custom_call.1} parent=1 // loop_header
      %s55 = sphi 0, %s59
      %p56 = scmp.ge.s32.totalorder %s55, 16
    $region24: #{tpu_custom_call.1} parent=1 // loop_header_branch
      %58 = sbr.rel (%p56) target = $region28
    $region25: #{tpu_custom_call.1} parent=1 // loop_body
      %s60 = smul.u32 %s55, 8
      %s61 = sadd.s32 %s53, %s60
      %s62 = sld [smem:[#allocation5 + %s61]]
      %s63 = sld [smem:[#allocation6 + %s61]]
      %s64 = scalar_lea.vmem [#allocation7], %s62
      %v65 = vld [vmem:[%s64] sm:$0x1]
      %s66 = scalar_lea.vmem [#allocation2], %s60
      %67 = vst [vmem:[%s66] sm:$0x1] %v65
      %s68 = scalar_lea.vmem [#allocation10], %s63
      %v69 = vld [vmem:[%s68] sm:$0x1]
      %s70 = scalar_lea.vmem [#allocation3], %s60
      %71 = vst [vmem:[%s70] sm:$0x1] %v69
      %s72 = sadd.s32 %s60, 1
      %s73 = sadd.s32 %s53, %s72
      %s74 = sld [smem:[#allocation5 + %s73]]
      %s75 = sld [smem:[#allocation6 + %s73]]
      %s76 = scalar_lea.vmem [#allocation7], %s74
      %v77 = vld [vmem:[%s76] sm:$0x1]
      %s78 = scalar_lea.vmem [#allocation2], %s72
      %79 = vst [vmem:[%s78] sm:$0x1] %v77
      %s80 = scalar_lea.vmem [#allocation10], %s75
      %v81 = vld [vmem:[%s80] sm:$0x1]
      %s82 = scalar_lea.vmem [#allocation3], %s72
      %83 = vst [vmem:[%s82] sm:$0x1] %v81
      %s84 = sadd.s32 %s60, 2
      %s85 = sadd.s32 %s53, %s84
      %s86 = sld [smem:[#allocation5 + %s85]]
      %s87 = sld [smem:[#allocation6 + %s85]]
      %s88 = scalar_lea.vmem [#allocation7], %s86
      %v89 = vld [vmem:[%s88] sm:$0x1]
      %s90 = scalar_lea.vmem [#allocation2], %s84
      %91 = vst [vmem:[%s90] sm:$0x1] %v89
      %s92 = scalar_lea.vmem [#allocation10], %s87
      %v93 = vld [vmem:[%s92] sm:$0x1]
      %s94 = scalar_lea.vmem [#allocation3], %s84
      %95 = vst [vmem:[%s94] sm:$0x1] %v93
      %s96 = sadd.s32 %s60, 3
      %s97 = sadd.s32 %s53, %s96
      %s98 = sld [smem:[#allocation5 + %s97]]
      %s99 = sld [smem:[#allocation6 + %s97]]
      %s100 = scalar_lea.vmem [#allocation7], %s98
      %v101 = vld [vmem:[%s100] sm:$0x1]
      %s102 = scalar_lea.vmem [#allocation2], %s96
      %103 = vst [vmem:[%s102] sm:$0x1] %v101
      %s104 = scalar_lea.vmem [#allocation10], %s99
      %v105 = vld [vmem:[%s104] sm:$0x1]
      %s106 = scalar_lea.vmem [#allocation3], %s96
      %107 = vst [vmem:[%s106] sm:$0x1] %v105
      %s108 = sadd.s32 %s60, 4
      %s109 = sadd.s32 %s53, %s108
      %s110 = sld [smem:[#allocation5 + %s109]]
      %s111 = sld [smem:[#allocation6 + %s109]]
      %s112 = scalar_lea.vmem [#allocation7], %s110
      %v113 = vld [vmem:[%s112] sm:$0x1]
      %s114 = scalar_lea.vmem [#allocation2], %s108
      %115 = vst [vmem:[%s114] sm:$0x1] %v113
      %s116 = scalar_lea.vmem [#allocation10], %s111
      %v117 = vld [vmem:[%s116] sm:$0x1]
      %s118 = scalar_lea.vmem [#allocation3], %s108
      %119 = vst [vmem:[%s118] sm:$0x1] %v117
      %s120 = sadd.s32 %s60, 5
      %s121 = sadd.s32 %s53, %s120
      %s122 = sld [smem:[#allocation5 + %s121]]
      %s123 = sld [smem:[#allocation6 + %s121]]
      %s124 = scalar_lea.vmem [#allocation7], %s122
      %v125 = vld [vmem:[%s124] sm:$0x1]
      %s126 = scalar_lea.vmem [#allocation2], %s120
      %127 = vst [vmem:[%s126] sm:$0x1] %v125
      %s128 = scalar_lea.vmem [#allocation10], %s123
      %v129 = vld [vmem:[%s128] sm:$0x1]
      %s130 = scalar_lea.vmem [#allocation3], %s120
      %131 = vst [vmem:[%s130] sm:$0x1] %v129
      %s132 = sadd.s32 %s60, 6
      %s133 = sadd.s32 %s53, %s132
      %s134 = sld [smem:[#allocation5 + %s133]]
      %s135 = sld [smem:[#allocation6 + %s133]]
      %s136 = scalar_lea.vmem [#allocation7], %s134
      %v137 = vld [vmem:[%s136] sm:$0x1]
      %s138 = scalar_lea.vmem [#allocation2], %s132
      %139 = vst [vmem:[%s138] sm:$0x1] %v137
      %s140 = scalar_lea.vmem [#allocation10], %s135
      %v141 = vld [vmem:[%s140] sm:$0x1]
      %s142 = scalar_lea.vmem [#allocation3], %s132
      %143 = vst [vmem:[%s142] sm:$0x1] %v141
      %s144 = sadd.s32 %s60, 7
      %s145 = sadd.s32 %s53, %s144
      %s146 = sld [smem:[#allocation5 + %s145]]
      %s147 = sld [smem:[#allocation6 + %s145]]
      %s148 = scalar_lea.vmem [#allocation7], %s146
      %v149 = vld [vmem:[%s148] sm:$0x1]
      %s150 = scalar_lea.vmem [#allocation2], %s144
      %151 = vst [vmem:[%s150] sm:$0x1] %v149
      %s152 = scalar_lea.vmem [#allocation10], %s147
      %v153 = vld [vmem:[%s152] sm:$0x1]
      %s154 = scalar_lea.vmem [#allocation3], %s144
      %155 = vst [vmem:[%s154] sm:$0x1] %v153
    $region26: #{tpu_custom_call.1} parent=1 // loop_footer
      %s59 = sadd.s32 1, %s55
    $region27: #{tpu_custom_call.1} parent=1 // loop_footer_branch
      %54 = sbr.rel target = $region23
    $region28: #{tpu_custom_call.1} parent=1 // loop_exit
      _
    %v156 = vld [vmem:[#allocation2] sm:$0xff]
    %v157 = vld [vmem:[#allocation2 + $0x8] sm:$0xff]
    %v158 = vld [vmem:[#allocation2 + $0x10] sm:$0xff]
    %v159 = vld [vmem:[#allocation2 + $0x18] sm:$0xff]
    %v160 = vld [vmem:[#allocation2 + $0x20] sm:$0xff]
    %v161 = vld [vmem:[#allocation2 + $0x28] sm:$0xff]
    %v162 = vld [vmem:[#allocation2 + $0x30] sm:$0xff]
    %v163 = vld [vmem:[#allocation2 + $0x38] sm:$0xff]
    %v164 = vld [vmem:[#allocation2 + $0x40] sm:$0xff]
    %v165 = vld [vmem:[#allocation2 + $0x48] sm:$0xff]
    %v166 = vld [vmem:[#allocation2 + $0x50] sm:$0xff]
    %v167 = vld [vmem:[#allocation2 + $0x58] sm:$0xff]
    %v168 = vld [vmem:[#allocation2 + $0x60] sm:$0xff]
    %v169 = vld [vmem:[#allocation2 + $0x68] sm:$0xff]
    %v170 = vld [vmem:[#allocation2 + $0x70] sm:$0xff]
    %v171 = vld [vmem:[#allocation2 + $0x78] sm:$0xff]
    %v172 = vld [vmem:[#allocation3] sm:$0xff]
    %v173 = vld [vmem:[#allocation3 + $0x8] sm:$0xff]
    %v174 = vld [vmem:[#allocation3 + $0x10] sm:$0xff]
    %v175 = vld [vmem:[#allocation3 + $0x18] sm:$0xff]
    %v176 = vld [vmem:[#allocation3 + $0x20] sm:$0xff]
    %v177 = vld [vmem:[#allocation3 + $0x28] sm:$0xff]
    %v178 = vld [vmem:[#allocation3 + $0x30] sm:$0xff]
    %v179 = vld [vmem:[#allocation3 + $0x38] sm:$0xff]
    %v180 = vld [vmem:[#allocation3 + $0x40] sm:$0xff]
    %v181 = vld [vmem:[#allocation3 + $0x48] sm:$0xff]
    %v182 = vld [vmem:[#allocation3 + $0x50] sm:$0xff]
    %v183 = vld [vmem:[#allocation3 + $0x58] sm:$0xff]
    %v184 = vld [vmem:[#allocation3 + $0x60] sm:$0xff]
    %v185 = vld [vmem:[#allocation3 + $0x68] sm:$0xff]
    %v186 = vld [vmem:[#allocation3 + $0x70] sm:$0xff]
    %v187 = vld [vmem:[#allocation3 + $0x78] sm:$0xff]
    %v188 = vmul.f32 %v156, %v172
    %v189 = vmul.f32 %v157, %v173
    %v190 = vmul.f32 %v158, %v174
    %v191 = vmul.f32 %v159, %v175
    %v192 = vmul.f32 %v160, %v176
    %v193 = vmul.f32 %v161, %v177
    %v194 = vmul.f32 %v162, %v178
    %v195 = vmul.f32 %v163, %v179
    %v196 = vmul.f32 %v164, %v180
    %v197 = vmul.f32 %v165, %v181
    %v198 = vmul.f32 %v166, %v182
    %v199 = vmul.f32 %v167, %v183
    %v200 = vmul.f32 %v168, %v184
    %v201 = vmul.f32 %v169, %v185
    %v202 = vmul.f32 %v170, %v186
    %v203 = vmul.f32 %v171, %v187
    %204 = vadd.xlane.f32.xlu0 %v188
    %v205 = vpop.xlane.xlu0 %204
    %206 = vadd.xlane.f32.xlu0 %v189
    %v207 = vpop.xlane.xlu0 %206
    %208 = vadd.xlane.f32.xlu0 %v190
    %v209 = vpop.xlane.xlu0 %208
    %210 = vadd.xlane.f32.xlu0 %v191
    %v211 = vpop.xlane.xlu0 %210
    %212 = vadd.xlane.f32.xlu0 %v192
    %v213 = vpop.xlane.xlu0 %212
    %214 = vadd.xlane.f32.xlu0 %v193
    %v215 = vpop.xlane.xlu0 %214
    %216 = vadd.xlane.f32.xlu0 %v194
    %v217 = vpop.xlane.xlu0 %216
    %218 = vadd.xlane.f32.xlu0 %v195
    %v219 = vpop.xlane.xlu0 %218
    %220 = vadd.xlane.f32.xlu0 %v196
    %v221 = vpop.xlane.xlu0 %220
    %222 = vadd.xlane.f32.xlu0 %v197
    %v223 = vpop.xlane.xlu0 %222
    %224 = vadd.xlane.f32.xlu0 %v198
    %v225 = vpop.xlane.xlu0 %224
    %226 = vadd.xlane.f32.xlu0 %v199
    %v227 = vpop.xlane.xlu0 %226
    %228 = vadd.xlane.f32.xlu0 %v200
    %v229 = vpop.xlane.xlu0 %228
    %230 = vadd.xlane.f32.xlu0 %v201
    %v231 = vpop.xlane.xlu0 %230
    %232 = vadd.xlane.f32.xlu0 %v202
    %v233 = vpop.xlane.xlu0 %232
    %234 = vadd.xlane.f32.xlu0 %v203
    %v235 = vpop.xlane.xlu0 %234
    %v236 = vld [vmem:[%s4] sm:$0x1]
    %v238 = vlaneseq
    %v239 = vshrl.u32 %v238, 7
    %v240 = vsub.s32 0, %v239
    %v241 = vrot.slane %v236, %v240
    %243 = vbcast.lane.b32.xlu0 %v241, 256
    %v244 = vpop.permute.xlu0 %243
    %s246 = sor.u32 256, 8
    %247 = vbcast.lane.b32.xlu0 %v241, %s246
    %v248 = vpop.permute.xlu0 %247
    %s250 = sor.u32 256, 16
    %251 = vbcast.lane.b32.xlu0 %v241, %s250
    %v252 = vpop.permute.xlu0 %251
    %s254 = sor.u32 256, 24
    %255 = vbcast.lane.b32.xlu0 %v241, %s254
    %v256 = vpop.permute.xlu0 %255
    %s258 = sor.u32 256, 32
    %259 = vbcast.lane.b32.xlu0 %v241, %s258
    %v260 = vpop.permute.xlu0 %259
    %s262 = sor.u32 256, 40
    %263 = vbcast.lane.b32.xlu0 %v241, %s262
    %v264 = vpop.permute.xlu0 %263
    %s266 = sor.u32 256, 48
    %267 = vbcast.lane.b32.xlu0 %v241, %s266
    %v268 = vpop.permute.xlu0 %267
    %s270 = sor.u32 256, 56
    %271 = vbcast.lane.b32.xlu0 %v241, %s270
    %v272 = vpop.permute.xlu0 %271
    %s274 = sor.u32 256, 64
    %275 = vbcast.lane.b32.xlu0 %v241, %s274
    %v276 = vpop.permute.xlu0 %275
    %s278 = sor.u32 256, 72
    %279 = vbcast.lane.b32.xlu0 %v241, %s278
    %v280 = vpop.permute.xlu0 %279
    %s282 = sor.u32 256, 80
    %283 = vbcast.lane.b32.xlu0 %v241, %s282
    %v284 = vpop.permute.xlu0 %283
    %s286 = sor.u32 256, 88
    %287 = vbcast.lane.b32.xlu0 %v241, %s286
    %v288 = vpop.permute.xlu0 %287
    %s290 = sor.u32 256, 96
    %291 = vbcast.lane.b32.xlu0 %v241, %s290
    %v292 = vpop.permute.xlu0 %291
    %s294 = sor.u32 256, 104
    %295 = vbcast.lane.b32.xlu0 %v241, %s294
    %v296 = vpop.permute.xlu0 %295
    %s298 = sor.u32 256, 112
    %299 = vbcast.lane.b32.xlu0 %v241, %s298
    %v300 = vpop.permute.xlu0 %299
    %s302 = sor.u32 256, 120
    %303 = vbcast.lane.b32.xlu0 %v241, %s302
    %v304 = vpop.permute.xlu0 %303
    %v321 = vadd.f32 %v205, %v244
    %v322 = vadd.f32 %v207, %v248
    %v323 = vadd.f32 %v209, %v252
    %v324 = vadd.f32 %v211, %v256
    %v325 = vadd.f32 %v213, %v260
    %v326 = vadd.f32 %v215, %v264
    %v327 = vadd.f32 %v217, %v268
    %v328 = vadd.f32 %v219, %v272
    %v329 = vadd.f32 %v221, %v276
    %v330 = vadd.f32 %v223, %v280
    %v331 = vadd.f32 %v225, %v284
    %v332 = vadd.f32 %v227, %v288
    %v333 = vadd.f32 %v229, %v292
    %v334 = vadd.f32 %v231, %v296
    %v335 = vadd.f32 %v233, %v300
    %v336 = vadd.f32 %v235, %v304
    %353 = vset.pattern.permute.xlu0 0
    %354 = vperm.xlu0 %353, %v321
    %v355 = vpop.permute.xlu0 %354
    %356 = vset.pattern.permute.xlu0 0
    %357 = vperm.xlu0 %356, %v322
    %v358 = vpop.permute.xlu0 %357
    %359 = vset.pattern.permute.xlu0 0
    %360 = vperm.xlu0 %359, %v323
    %v361 = vpop.permute.xlu0 %360
    %362 = vset.pattern.permute.xlu0 0
    %363 = vperm.xlu0 %362, %v324
    %v364 = vpop.permute.xlu0 %363
    %365 = vset.pattern.permute.xlu0 0
    %366 = vperm.xlu0 %365, %v325
    %v367 = vpop.permute.xlu0 %366
    %368 = vset.pattern.permute.xlu0 0
    %369 = vperm.xlu0 %368, %v326
    %v370 = vpop.permute.xlu0 %369
    %371 = vset.pattern.permute.xlu0 0
    %372 = vperm.xlu0 %371, %v327
    %v373 = vpop.permute.xlu0 %372
    %374 = vset.pattern.permute.xlu0 0
    %375 = vperm.xlu0 %374, %v328
    %v376 = vpop.permute.xlu0 %375
    %377 = vset.pattern.permute.xlu0 0
    %378 = vperm.xlu0 %377, %v329
    %v379 = vpop.permute.xlu0 %378
    %380 = vset.pattern.permute.xlu0 0
    %381 = vperm.xlu0 %380, %v330
    %v382 = vpop.permute.xlu0 %381
    %383 = vset.pattern.permute.xlu0 0
    %384 = vperm.xlu0 %383, %v331
    %v385 = vpop.permute.xlu0 %384
    %386 = vset.pattern.permute.xlu0 0
    %387 = vperm.xlu0 %386, %v332
    %v388 = vpop.permute.xlu0 %387
    %389 = vset.pattern.permute.xlu0 0
    %390 = vperm.xlu0 %389, %v333
    %v391 = vpop.permute.xlu0 %390
    %392 = vset.pattern.permute.xlu0 0
    %393 = vperm.xlu0 %392, %v334
    %v394 = vpop.permute.xlu0 %393
    %395 = vset.pattern.permute.xlu0 0
    %396 = vperm.xlu0 %395, %v335
    %v397 = vpop.permute.xlu0 %396
    %398 = vset.pattern.permute.xlu0 0
    %399 = vperm.xlu0 %398, %v336
    %v400 = vpop.permute.xlu0 %399
    %v401 = vlaneseq
    %v402 = vand.u32 %v401, 127
    %v403 = vlaneseq
    %v404 = vshrl.u32 %v403, 7
    %v405 = vsub.s32 %v402, %v404
    %v406 = vrot.slane %v355, %v405
    %v407 = vadd.s32 %v402, 4294967288
    %v408 = vlaneseq
    %v409 = vshrl.u32 %v408, 7
    %v410 = vsub.s32 %v407, %v409
    %v411 = vrot.slane %v358, %v410
    %vm412 = vcmask 130112
    %v413 = vsel %vm412, %v411, %v406
    %v414 = vadd.s32 %v402, 4294967280
    %v415 = vlaneseq
    %v416 = vshrl.u32 %v415, 7
    %v417 = vsub.s32 %v414, %v416
    %v418 = vrot.slane %v361, %v417
    %vm419 = vcmask 195712
    %v420 = vsel %vm419, %v418, %v413
    %v421 = vadd.s32 %v402, 4294967272
    %v422 = vlaneseq
    %v423 = vshrl.u32 %v422, 7
    %v424 = vsub.s32 %v421, %v423
    %v425 = vrot.slane %v364, %v424
    %vm426 = vcmask 261312
    %v427 = vsel %vm426, %v425, %v420
    %v428 = vadd.s32 %v402, 4294967264
    %v429 = vlaneseq
    %v430 = vshrl.u32 %v429, 7
    %v431 = vsub.s32 %v428, %v430
    %v432 = vrot.slane %v367, %v431
    %vm433 = vcmask 326912
    %v434 = vsel %vm433, %v432, %v427
    %v435 = vadd.s32 %v402, 4294967256
    %v436 = vlaneseq
    %v437 = vshrl.u32 %v436, 7
    %v438 = vsub.s32 %v435, %v437
    %v439 = vrot.slane %v370, %v438
    %vm440 = vcmask 392512
    %v441 = vsel %vm440, %v439, %v434
    %v442 = vadd.s32 %v402, 4294967248
    %v443 = vlaneseq
    %v444 = vshrl.u32 %v443, 7
    %v445 = vsub.s32 %v442, %v444
    %v446 = vrot.slane %v373, %v445
    %vm447 = vcmask 458112
    %v448 = vsel %vm447, %v446, %v441
    %v449 = vadd.s32 %v402, 4294967240
    %v450 = vlaneseq
    %v451 = vshrl.u32 %v450, 7
    %v452 = vsub.s32 %v449, %v451
    %v453 = vrot.slane %v376, %v452
    %vm454 = vcmask 523712
    %v455 = vsel %vm454, %v453, %v448
    %v456 = vadd.s32 %v402, 4294967232
    %v457 = vlaneseq
    %v458 = vshrl.u32 %v457, 7
    %v459 = vsub.s32 %v456, %v458
    %v460 = vrot.slane %v379, %v459
    %vm461 = vcmask 589312
    %v462 = vsel %vm461, %v460, %v455
    %v463 = vadd.s32 %v402, 4294967224
    %v464 = vlaneseq
    %v465 = vshrl.u32 %v464, 7
    %v466 = vsub.s32 %v463, %v465
    %v467 = vrot.slane %v382, %v466
    %vm468 = vcmask 654912
    %v469 = vsel %vm468, %v467, %v462
    %v470 = vadd.s32 %v402, 4294967216
    %v471 = vlaneseq
    %v472 = vshrl.u32 %v471, 7
    %v473 = vsub.s32 %v470, %v472
    %v474 = vrot.slane %v385, %v473
    %vm475 = vcmask 720512
    %v476 = vsel %vm475, %v474, %v469
    %v477 = vadd.s32 %v402, 4294967208
    %v478 = vlaneseq
    %v479 = vshrl.u32 %v478, 7
    %v480 = vsub.s32 %v477, %v479
    %v481 = vrot.slane %v388, %v480
    %vm482 = vcmask 786112
    %v483 = vsel %vm482, %v481, %v476
    %v484 = vadd.s32 %v402, 4294967200
    %v485 = vlaneseq
    %v486 = vshrl.u32 %v485, 7
    %v487 = vsub.s32 %v484, %v486
    %v488 = vrot.slane %v391, %v487
    %vm489 = vcmask 851712
    %v490 = vsel %vm489, %v488, %v483
    %v491 = vadd.s32 %v402, 4294967192
    %v492 = vlaneseq
    %v493 = vshrl.u32 %v492, 7
    %v494 = vsub.s32 %v491, %v493
    %v495 = vrot.slane %v394, %v494
    %vm496 = vcmask 917312
    %v497 = vsel %vm496, %v495, %v490
    %v498 = vadd.s32 %v402, 4294967184
    %v499 = vlaneseq
    %v500 = vshrl.u32 %v499, 7
    %v501 = vsub.s32 %v498, %v500
    %v502 = vrot.slane %v397, %v501
    %vm503 = vcmask 982912
    %v504 = vsel %vm503, %v502, %v497
    %v505 = vadd.s32 %v402, 4294967176
    %v506 = vlaneseq
    %v507 = vshrl.u32 %v506, 7
    %v508 = vsub.s32 %v505, %v507
    %v509 = vrot.slane %v400, %v508
    %vm510 = vcmask 1048512
    %v511 = vsel %vm510, %v509, %v504
    %513 = vst [vmem:[#allocation12] sm:$0x1] %v511
    // Predicated region
    $region29: #{tpu_custom_call.1} parent=1 // pred_check
      _
    $region30: #{tpu_custom_call.1} parent=1 // pred_check_branch
      %515 = sbr.rel (0) target = $region32
    $region31: #{tpu_custom_call.1} parent=1 // pred_region
      %s517 = ssub.s32 16, 16
      %518 = vsyncadd [#allocation9], %s517
      %s520 = sshll.u32 [#allocation12], 4
      %s521 = int_to_ptr.vmem [resolvable:$true] %s520
      %523 = dma.vmem_to_hbm [thread:$0]  %s521, 16, %s5, [#allocation9]
    $region32: #{tpu_custom_call.1} parent=1 // pred_fallthru
      _
    // Predicated region
    $region33: #{tpu_custom_call.1} parent=1 // pred_check
      _
    $region34: #{tpu_custom_call.1} parent=1 // pred_check_branch
      %525 = sbr.rel (0) target = $region36
    $region35: #{tpu_custom_call.1} parent=1 // pred_region
      %526 = dma.done [#allocation9], 16
    $region36: #{tpu_custom_call.1} parent=1 // pred_fallthru
      _
    %527 = vsyncpa [#allocation8], 1
    %528 = vsyncpa [#allocation11], 1
    %529 = vsyncpa [#allocation9], 1

</llo_original>
